<compile_context>
chip_gen: v6e
topology: v6e:2x2x1
jax: 0.10.0
libtpu: 0.0.40
codegen_flags: <defaults>
</compile_context>

<pallas_src>
import jax
import jax.numpy as jnp
from jax import lax
from jax.experimental import pallas as pl
from jax.experimental.pallas import tpu as pltpu


# --------------------------------------------------------------------------- #
# Kernels
# --------------------------------------------------------------------------- #
def _forward_kernel(w_ref, x_ref, ft_ref, o_ref):
    """Full forward: w (E,1), X (E,W), filters_T (W,F) -> out (1,F)."""
    # Weighted row-sum on VPU + sublane reduce (XLU): (E,1)*(E,W) -> (1,W).
    mixed = jnp.sum(w_ref[...] * x_ref[...], axis=0, keepdims=True)
    # Wavelength contraction on the MXU with lane-major K: (1,W)@(W,F) -> (1,F).
    o_ref[...] = jnp.dot(
        mixed, ft_ref[...], preferred_element_type=jnp.float32
    ).astype(o_ref.dtype)


def _precompute_kernel(x_ref, ft_ref, a_ref):
    """One-time constant contraction: A = X @ filters.T, (E,W)@(W,F)->(E,F)."""
    a_ref[...] = jnp.dot(
        x_ref[...], ft_ref[...], preferred_element_type=jnp.float32
    ).astype(a_ref.dtype)


def _fast_forward_kernel(w_ref, a_ref, o_ref):
    """Per-step forward with precomputed A: (E,1)*(E,F) summed over E -> (1,F)."""
    o_ref[...] = jnp.sum(
        w_ref[...] * a_ref[...], axis=0, keepdims=True
    ).astype(o_ref.dtype)


def _make_train_kernel(n_iter, n_filters, lr, beta1, beta2, eps):
    """Fused Adam training loop over the L1 objective, fully VMEM-resident."""
    inv_f = 1.0 / float(n_filters)

    def _train_kernel(w0_ref, a_ref, tgt_ref,
                      w_out_ref, pred_out_ref, loss_out_ref,
                      w_ref, m_ref, v_ref):
        # Init optimizer state in VMEM scratch.
        w_ref[...] = w0_ref[...]
        m_ref[...] = jnp.zeros_like(m_ref)
        v_ref[...] = jnp.zeros_like(v_ref)

        a = a_ref[...]      # (E, F) constant, loop-invariant in vregs
        tgt = tgt_ref[...]  # (1, F)

        def body(_, carry):
            b1_t, b2_t = carry
            w = w_ref[...]                                     # (E, 1)
            # forward: pred_f = sum_e w_e * A[e, f]
            pred = jnp.sum(w * a, axis=0, keepdims=True)       # (1, F)
            r = pred - tgt
            # d(L1 mean)/d(pred) = sign(r)/F
            g_pred = jnp.where(r > 0, 1.0,
                               jnp.where(r < 0, -1.0, 0.0)) * inv_f   # (1, F)
            # d loss / d w_e = sum_f A[e, f] * g_pred[f]  (lane reduce on XLU)
            g = jnp.sum(a * g_pred, axis=1, keepdims=True)     # (E, 1)

            # Adam update (bias-corrected), then clamp to [0, 5] as in PyTorch.
            m = beta1 * m_ref[...] + (1.0 - beta1) * g
            v = beta2 * v_ref[...] + (1.0 - beta2) * (g * g)
            b1_t = b1_t * beta1
            b2_t = b2_t * beta2
            m_hat = m / (1.0 - b1_t)
            v_hat = v / (1.0 - b2_t)
            w_new = w - lr * m_hat / (jnp.sqrt(v_hat) + eps)

            w_ref[...] = jnp.clip(w_new, 0.0, 5.0)
            m_ref[...] = m
            v_ref[...] = v
            return (b1_t, b2_t)

        lax.fori_loop(0, n_iter, body,
                      (jnp.float32(1.0), jnp.float32(1.0)))

        w_fin = w_ref[...]
        pred_fin = jnp.sum(w_fin * a, axis=0, keepdims=True)
        w_out_ref[...] = w_fin
        pred_out_ref[...] = pred_fin
        loss_out_ref[...] = jnp.mean(jnp.abs(pred_fin - tgt), keepdims=True)

    return _train_kernel


# --------------------------------------------------------------------------- #
# Wrappers
# --------------------------------------------------------------------------- #
_VMEM_SPEC = pl.BlockSpec(memory_space=pltpu.MemorySpace.VMEM)


def endmember_forward(endmember_weights, X, filters):
    """Pallas equivalent of EndmemberOptimizer.forward.

    endmember_weights: (E,)   float32
    X:                 (E, W) float32
    filters:           (F, W) float32
    returns:           (F,)   float32
    """
    E, _ = X.shape
    F = filters.shape[0]
    w_col = endmember_weights.reshape(E, 1).astype(jnp.float32)
    filters_T = jnp.transpose(filters).astype(jnp.float32)  # (W, F) constant

    out = pl.pallas_call(
        _forward_kernel,
        out_shape=jax.ShapeDtypeStruct((1, F), jnp.float32),
        in_specs=[_VMEM_SPEC, _VMEM_SPEC, _VMEM_SPEC],
        out_specs=_VMEM_SPEC,
    )(w_col, X.astype(jnp.float32), filters_T)
    return out.reshape(F)


def precompute_response_matrix(X, filters):
    """One-time precompute A = X @ filters.T (the constants of the Adam loop)."""
    E, _ = X.shape
    F = filters.shape[0]
    filters_T = jnp.transpose(filters).astype(jnp.float32)  # (W, F)
    return pl.pallas_call(
        _precompute_kernel,
        out_shape=jax.ShapeDtypeStruct((E, F), jnp.float32),
        in_specs=[_VMEM_SPEC, _VMEM_SPEC],
        out_specs=_VMEM_SPEC,
    )(X.astype(jnp.float32), filters_T)


def endmember_forward_fast(endmember_weights, A):
    """Per-step forward given precomputed A (E,F): returns (F,)."""
    E, F = A.shape
    w_col = endmember_weights.reshape(E, 1).astype(jnp.float32)
    out = pl.pallas_call(
        _fast_forward_kernel,
        out_shape=jax.ShapeDtypeStruct((1, F), jnp.float32),
        in_specs=[_VMEM_SPEC, _VMEM_SPEC],
        out_specs=_VMEM_SPEC,
    )(w_col, A.astype(jnp.float32))
    return out.reshape(F)


def endmember_train(endmember_weights, X, filters, target, *,
                    n_iter=5000, lr=0.01, beta1=0.9, beta2=0.999, eps=1e-8):
    """Fully fused EndmemberOptimizer.train_loop: one kernel runs all steps.

    Returns (final_weights (E,), final_predictions (F,), final_loss scalar).
    """
    E, _ = X.shape
    F = filters.shape[0]
    A = precompute_response_matrix(X, filters)                  # (E, F) constants
    w0 = endmember_weights.reshape(E, 1).astype(jnp.float32)
    tgt = target.reshape(1, F).astype(jnp.float32)

    kernel = _make_train_kernel(n_iter, F, lr, beta1, beta2, eps)
    w_fin, pred_fin, loss_fin = pl.pallas_call(
        kernel,
        out_shape=(
            jax.ShapeDtypeStruct((E, 1), jnp.float32),
            jax.ShapeDtypeStruct((1, F), jnp.float32),
            jax.ShapeDtypeStruct((1, 1), jnp.float32),
        ),
        in_specs=[_VMEM_SPEC, _VMEM_SPEC, _VMEM_SPEC],
        out_specs=(_VMEM_SPEC, _VMEM_SPEC, _VMEM_SPEC),
        scratch_shapes=[
            pltpu.VMEM((E, 1), jnp.float32),   # weights
            pltpu.VMEM((E, 1), jnp.float32),   # Adam m
            pltpu.VMEM((E, 1), jnp.float32),   # Adam v
        ],
    )(w0, A, tgt)
    return w_fin.reshape(E), pred_fin.reshape(F), loss_fin.reshape(())


# --------------------------------------------------------------------------- #
# Self-test
# --------------------------------------------------------------------------- #
if __name__ == "__main__":
    # Small, module-consistent shapes.
    nr_of_endmembers = 8    # E
    n_wavelengths = 256     # W
    n_filters = 16          # F

    key = jax.random.PRNGKey(0)
    k_w, k_x, k_f, k_t = jax.random.split(key, 4)

    # Deterministic stand-in for torch.distributions.Uniform(0, 0.1).sample((E,))
    endmember_weights = jax.random.uniform(
        k_w, (nr_of_endmembers,), dtype=jnp.float32, minval=0.0, maxval=0.1
    )
    # Input endmember spectra X: (E, W)
    X = jax.random.uniform(k_x, (nr_of_endmembers, n_wavelengths), dtype=jnp.float32)
    # Filter transmission spectra: (F, W)
    filters = jax.random.uniform(k_f, (n_filters, n_wavelengths), dtype=jnp.float32)

    # ---- forward (full, general path) -------------------------------------
    out = endmember_forward(endmember_weights, X, filters)
    jax.block_until_ready(out)

    # ---- forward (training-loop-optimized path) ----------------------------
    A = precompute_response_matrix(X, filters)
    jax.block_until_ready(A)
    out_fast = endmember_forward_fast(endmember_weights, A)
    jax.block_until_ready(out_fast)

    # Reference check in plain JAX (same math as the PyTorch forward).
    ref = (endmember_weights @ X) @ filters.T
    assert out.shape == (n_filters,)
    assert out_fast.shape == (n_filters,)
    assert jnp.allclose(out, ref, rtol=1e-5, atol=1e-5)
    assert jnp.allclose(out_fast, ref, rtol=1e-5, atol=1e-5)
    assert jnp.allclose(A, X @ filters.T, rtol=1e-5, atol=1e-5)

    # ---- fused Adam training loop (structural optimization) ----------------
    # Synthetic target from a "true" concentration vector.
    w_true = jax.random.uniform(k_t, (nr_of_endmembers,), dtype=jnp.float32,
                                minval=0.5, maxval=1.5)
    target = (w_true @ X) @ filters.T

    loss0 = jnp.mean(jnp.abs(out_fast - target))
    w_fin, pred_fin, loss_fin = endmember_train(
        endmember_weights, X, filters, target, n_iter=300, lr=0.01)
    jax.block_until_ready((w_fin, pred_fin, loss_fin))

    assert w_fin.shape == (nr_of_endmembers,)
    assert pred_fin.shape == (n_filters,)
    assert bool(jnp.all(jnp.isfinite(w_fin)))
    assert bool(jnp.all(jnp.isfinite(pred_fin)))
    assert bool(jnp.isfinite(loss_fin))
    # Clamp [0, 5] respected, and optimization made progress on the L1 loss.
    assert bool(jnp.all((w_fin >= 0.0) & (w_fin <= 5.0)))
    assert float(loss_fin) < 0.9 * float(loss0)
    # Final predictions are consistent with the standalone fast forward.
    assert jnp.allclose(pred_fin, endmember_forward_fast(w_fin, A),
                        rtol=1e-5, atol=1e-5)

    # TODO(synk): per-step loss history (host-side list + tqdm in the PyTorch
    # train_loop) is host bookkeeping and is not materialized by the fused kernel.
    print("KERNEL_OK")
</pallas_src>

<mosaic_0001>
module attributes {stable_mosaic.version = 11 : i64} {
  func.func @_forward_kernel(%arg0: memref<8x1xf32, #tpu.memory_space<vmem>>, %arg1: memref<8x256xf32, #tpu.memory_space<vmem>>, %arg2: memref<256x16xf32, #tpu.memory_space<vmem>>, %arg3: memref<1x16xf32, #tpu.memory_space<vmem>>) attributes {dimension_semantics = [], scalar_prefetch = 0 : i64, scratch_operands = 0 : i64, tpu.core_type = #tpu.core_type<tc>} {
    %c0 = arith.constant 0 : index
    %c0_0 = arith.constant 0 : index
    %0 = vector.load %arg0[%c0, %c0_0] : memref<8x1xf32, #tpu.memory_space<vmem>>, vector<8x1xf32>
    %c0_1 = arith.constant 0 : index
    %c0_2 = arith.constant 0 : index
    %1 = vector.load %arg1[%c0_1, %c0_2] : memref<8x256xf32, #tpu.memory_space<vmem>>, vector<8x256xf32>
    %2 = vector.broadcast %0 : vector<8x1xf32> to vector<8x256xf32>
    %3 = arith.mulf %2, %1 : vector<8x256xf32>
    %cst = arith.constant dense<0.000000e+00> : vector<256xf32>
    %4 = vector.multi_reduction <add>, %3, %cst [0] : vector<8x256xf32> to vector<256xf32>
    %5 = vector.shape_cast %4 : vector<256xf32> to vector<1x256xf32>
    %c0_3 = arith.constant 0 : index
    %c0_4 = arith.constant 0 : index
    %6 = vector.load %arg2[%c0_3, %c0_4] : memref<256x16xf32, #tpu.memory_space<vmem>>, vector<256x16xf32>
    %cst_5 = arith.constant dense<0.000000e+00> : vector<1x16xf32>
    %7 = tpu.matmul %5, %6, %cst_5 {dimension_numbers = #tpu.dot_dimension_numbers<[1], [0], [0], [1], [0, 0, 1, 1], [], []>} : vector<1x256xf32>, vector<256x16xf32>, vector<1x16xf32> -> vector<1x16xf32>
    %c0_6 = arith.constant 0 : index
    %c0_7 = arith.constant 0 : index
    %8 = vector.load %arg3[%c0_6, %c0_7] : memref<1x16xf32, #tpu.memory_space<vmem>>, vector<1x16xf32>
    tpu.vector_store %arg3[%c0_6, %c0_7], %7 {strides = array<i32>} : memref<1x16xf32, #tpu.memory_space<vmem>>, vector<1x16xf32>,
    return
  }
}

</mosaic_0001>

<llo_original>
// kernel: tpu_custom_call.1
$region0: #{tpu_custom_call.1}
  #allocation0 [shape = 'u32[]', space=smem, size = 0x4, offset = 0x4, fixed_abs, tag = 'smem constant byte address 0x4 - core index']
  #allocation1 [shape = 'u32[144,128]{1,0:T(1,128)}', space=vmem, size = 0x12000, scoped, tag = 'internal scratch']
  %s0 = inlined_call_operand.vmem [shape: f32[8,1], index: 0, kind: input, shape index: {}]
  %s1 = inlined_call_operand.vmem [shape: f32[8,256], index: 1, kind: input, shape index: {}]
  %s2 = inlined_call_operand.vmem [shape: f32[256,16], index: 2, kind: input, shape index: {}]
  %s3 = inlined_call_operand.hbm [shape: f32[1,16], index: 3, kind: output, shape index: {}]
  %s4 = sld [smem:[#allocation0]]
  $region22: #{tpu_custom_call.1} parent=0
    _
  %s6 = ssub.s32 1, %s4
  %s7 = scalar_select 0, %s6, %s4
  $region1: #{tpu_custom_call.1} parent=0
    #allocation2 [shape = 'u8[512]{0}', space=vmem, size = 0x400, scoped, tag = 'output window, operand 0, single buffered']
    #allocation3 [shape = 's32[1]{0}', space=sflag, size = 0x4, scoped, tag = 'scoped memory for tpu_custom_call.1']
    %8 = vsyncpa [#allocation3], 0
    // Predicated region
    $region2: #{tpu_custom_call.1} parent=1 // pred_check
      _
    $region3: #{tpu_custom_call.1} parent=1 // pred_check_branch
      %10 = sbr.rel (0) target = $region5
    $region4: #{tpu_custom_call.1} parent=1 // pred_region
      _
    $region5: #{tpu_custom_call.1} parent=1 // pred_fallthru
      _
    // Predicated region
    $region6: #{tpu_custom_call.1} parent=1 // pred_check
      _
    $region7: #{tpu_custom_call.1} parent=1 // pred_check_branch
      %12 = sbr.rel (0) target = $region9
    $region8: #{tpu_custom_call.1} parent=1 // pred_region
      _
    $region9: #{tpu_custom_call.1} parent=1 // pred_fallthru
      _
    // Predicated region
    $region10: #{tpu_custom_call.1} parent=1 // pred_check
      _
    $region11: #{tpu_custom_call.1} parent=1 // pred_check_branch
      %14 = sbr.rel (0) target = $region13
    $region12: #{tpu_custom_call.1} parent=1 // pred_region
      _
    $region13: #{tpu_custom_call.1} parent=1 // pred_fallthru
      _
    %v15 = vld [vmem:[%s0] sm:$0xff]
    %v16 = vld [vmem:[%s1] sm:$0xff]
    %v17 = vld [vmem:[%s1 + $0x8] sm:$0xff]
    %19 = vset.pattern.permute.xlu0 0
    %20 = vperm.xlu0 %19, %v15
    %v21 = vpop.permute.xlu0 %20
    %v23 = vmul.f32 %v21, %v16
    %v24 = vmul.f32 %v21, %v17
    %v25 = vrot.slane %v23, 4
    %v26 = vadd.f32 %v23, %v25
    %v27 = vrot.slane %v26, 2
    %v28 = vadd.f32 %v26, %v27
    %v29 = vrot.slane %v28, 1
    %v30 = vadd.f32 %v28, %v29
    %v31 = vrot.slane %v24, 4
    %v32 = vadd.f32 %v24, %v31
    %v33 = vrot.slane %v32, 2
    %v34 = vadd.f32 %v32, %v33
    %v35 = vrot.slane %v34, 1
    %v36 = vadd.f32 %v34, %v35
    %v37 = vld [vmem:[%s2] sm:$0xff]
    %v38 = vld [vmem:[%s2 + $0x8] sm:$0xff]
    %v39 = vld [vmem:[%s2 + $0x10] sm:$0xff]
    %v40 = vld [vmem:[%s2 + $0x18] sm:$0xff]
    %v41 = vld [vmem:[%s2 + $0x20] sm:$0xff]
    %v42 = vld [vmem:[%s2 + $0x28] sm:$0xff]
    %v43 = vld [vmem:[%s2 + $0x30] sm:$0xff]
    %v44 = vld [vmem:[%s2 + $0x38] sm:$0xff]
    %v45 = vld [vmem:[%s2 + $0x40] sm:$0xff]
    %v46 = vld [vmem:[%s2 + $0x48] sm:$0xff]
    %v47 = vld [vmem:[%s2 + $0x50] sm:$0xff]
    %v48 = vld [vmem:[%s2 + $0x58] sm:$0xff]
    %v49 = vld [vmem:[%s2 + $0x60] sm:$0xff]
    %v50 = vld [vmem:[%s2 + $0x68] sm:$0xff]
    %v51 = vld [vmem:[%s2 + $0x70] sm:$0xff]
    %v52 = vld [vmem:[%s2 + $0x78] sm:$0xff]
    %v53 = vld [vmem:[%s2 + $0x80] sm:$0xff]
    %v54 = vld [vmem:[%s2 + $0x88] sm:$0xff]
    %v55 = vld [vmem:[%s2 + $0x90] sm:$0xff]
    %v56 = vld [vmem:[%s2 + $0x98] sm:$0xff]
    %v57 = vld [vmem:[%s2 + $0xa0] sm:$0xff]
    %v58 = vld [vmem:[%s2 + $0xa8] sm:$0xff]
    %v59 = vld [vmem:[%s2 + $0xb0] sm:$0xff]
    %v60 = vld [vmem:[%s2 + $0xb8] sm:$0xff]
    %v61 = vld [vmem:[%s2 + $0xc0] sm:$0xff]
    %v62 = vld [vmem:[%s2 + $0xc8] sm:$0xff]
    %v63 = vld [vmem:[%s2 + $0xd0] sm:$0xff]
    %v64 = vld [vmem:[%s2 + $0xd8] sm:$0xff]
    %v65 = vld [vmem:[%s2 + $0xe0] sm:$0xff]
    %v66 = vld [vmem:[%s2 + $0xe8] sm:$0xff]
    %v67 = vld [vmem:[%s2 + $0xf0] sm:$0xff]
    %v68 = vld [vmem:[%s2 + $0xf8] sm:$0xff]
    %69 = vmatprep.subr.mxu0 0.0
    %70 = vmatpush1.msra.mxu0 %v52
    %71 = vmatprep.subr.mxu0 0.0
    %72 = vmatpush1.msra.mxu0 %v51
    %73 = vmatprep.subr.mxu0 0.0
    %74 = vmatpush1.msra.mxu0 %v50
    %75 = vmatprep.subr.mxu0 0.0
    %76 = vmatpush1.msra.mxu0 %v49
    %77 = vmatprep.subr.mxu0 0.0
    %78 = vmatpush1.msra.mxu0 %v48
    %79 = vmatprep.subr.mxu0 0.0
    %80 = vmatpush1.msra.mxu0 %v47
    %81 = vmatprep.subr.mxu0 0.0
    %82 = vmatpush1.msra.mxu0 %v46
    %83 = vmatprep.subr.mxu0 0.0
    %84 = vmatpush1.msra.mxu0 %v45
    %85 = vmatprep.subr.mxu0 0.0
    %86 = vmatpush1.msra.mxu0 %v44
    %87 = vmatprep.subr.mxu0 0.0
    %88 = vmatpush1.msra.mxu0 %v43
    %89 = vmatprep.subr.mxu0 0.0
    %90 = vmatpush1.msra.mxu0 %v42
    %91 = vmatprep.subr.mxu0 0.0
    %92 = vmatpush1.msra.mxu0 %v41
    %93 = vmatprep.subr.mxu0 0.0
    %94 = vmatpush1.msra.mxu0 %v40
    %95 = vmatprep.subr.mxu0 0.0
    %96 = vmatpush1.msra.mxu0 %v39
    %97 = vmatprep.subr.mxu0 0.0
    %98 = vmatpush1.msra.mxu0 %v38
    %99 = vmatprep.subr.mxu0 0.0
    %100 = vmatpush1.msra.mxu0 %v37
    %101 = vmatprep.subr.mxu0 0.0
    %102 = vmatpush2.msra.mxu0 %v68
    %103 = vmatprep.subr.mxu0 0.0
    %104 = vmatpush2.msra.mxu0 %v67
    %105 = vmatprep.subr.mxu0 0.0
    %106 = vmatpush2.msra.mxu0 %v66
    %107 = vmatprep.subr.mxu0 0.0
    %108 = vmatpush2.msra.mxu0 %v65
    %109 = vmatprep.subr.mxu0 0.0
    %110 = vmatpush2.msra.mxu0 %v64
    %111 = vmatprep.subr.mxu0 0.0
    %112 = vmatpush2.msra.mxu0 %v63
    %113 = vmatprep.subr.mxu0 0.0
    %114 = vmatpush2.msra.mxu0 %v62
    %115 = vmatprep.subr.mxu0 0.0
    %116 = vmatpush2.msra.mxu0 %v61
    %117 = vmatprep.subr.mxu0 0.0
    %118 = vmatpush2.msra.mxu0 %v60
    %119 = vmatprep.subr.mxu0 0.0
    %120 = vmatpush2.msra.mxu0 %v59
    %121 = vmatprep.subr.mxu0 0.0
    %122 = vmatpush2.msra.mxu0 %v58
    %123 = vmatprep.subr.mxu0 0.0
    %124 = vmatpush2.msra.mxu0 %v57
    %125 = vmatprep.subr.mxu0 0.0
    %126 = vmatpush2.msra.mxu0 %v56
    %127 = vmatprep.subr.mxu0 0.0
    %128 = vmatpush2.msra.mxu0 %v55
    %129 = vmatprep.subr.mxu0 0.0
    %130 = vmatpush2.msra.mxu0 %v54
    %131 = vmatprep.subr.mxu0 0.0
    %132 = vmatpush2.msra.mxu0 %v53
    %133 = vmatprep.mubr.f32.mxu0 %v36
    %134 = vmatmul.mubr.f32.gmra.mxu0 %v30
    %v135 = vpop.f32.mrf.mxu0
    %v136 = vadd.f32 0.0, %v135
    %v137 = vpop.f32.mrf.mxu0
    %138 = vdwg.mxu0
    %vm139 = vcmask 122880
    %140 = vst.msk [vmem:[#allocation2] sm:$0x1] %vm139, %v136
    // Predicated region
    $region14: #{tpu_custom_call.1} parent=1 // pred_check
      _
    $region15: #{tpu_custom_call.1} parent=1 // pred_check_branch
      %142 = sbr.rel (0) target = $region17
    $region16: #{tpu_custom_call.1} parent=1 // pred_region
      %s144 = ssub.s32 16, 16
      %145 = vsyncadd [#allocation3], %s144
      %s147 = sshll.u32 [#allocation2], 4
      %s148 = int_to_ptr.vmem [resolvable:$true] %s147
      %150 = dma.vmem_to_hbm [thread:$0]  %s148, 16, %s3, [#allocation3]
    $region17: #{tpu_custom_call.1} parent=1 // pred_fallthru
      _
    // Predicated region
    $region18: #{tpu_custom_call.1} parent=1 // pred_check
      _
    $region19: #{tpu_custom_call.1} parent=1 // pred_check_branch
      %152 = sbr.rel (0) target = $region21
    $region20: #{tpu_custom_call.1} parent=1 // pred_region
      %153 = dma.done [#allocation3], 16
    $region21: #{tpu_custom_call.1} parent=1 // pred_fallthru
      _
    %154 = vsyncpa [#allocation3], 1

</llo_original>
